<compile_context>
chip_gen: v5e
topology: v5e:2x2
jax: 0.10.0
libtpu: 0.0.40
codegen_flags: <defaults>
</compile_context>

<pallas_src>
import jax
import jax.numpy as jnp
from jax.experimental import pallas as pl
from jax.experimental.pallas import tpu as pltpu


def lstm_classifier_kernel(x_ref,      # (S*B, E)  time-major embedded tokens, flattened
                           wih_ref,    # (E, 4H)   fused input weights, gate order i,f,g,o
                           whh_ref,    # (H, 4H)   fused recurrent weights
                           b_ref,      # (1, 4H)   b_ih + b_hh, fused
                           h0_ref,     # (B, H)
                           c0_ref,     # (B, H)
                           wout_ref,   # (H, O)
                           bout_ref,   # (1, O)
                           out_ref):   # (B, O)    log-probs
    SB, _ = x_ref.shape
    B, H = h0_ref.shape
    S = SB // B

    # Hoisted input projection for ALL timesteps (off the recurrent critical
    # path): one (S*B, E) @ (E, 4H) MXU pass; bias folded in here once.
    x_proj = (jnp.dot(x_ref[...], wih_ref[...],
                      preferred_element_type=jnp.float32)
              + b_ref[...])                              # (S*B, 4H)

    w_hh = whh_ref[...]                                  # keep resident in vregs
    h = h0_ref[...]
    c = c0_ref[...]

    # Fully unrolled recurrence (S is small and static).  Per step:
    #   1 fused (B,H)@(H,4H) matmul + 2 wide transcendentals + VPU gate math.
    for t in range(S):
        pre = x_proj[t * B:(t + 1) * B, :] + jnp.dot(
            h, w_hh, preferred_element_type=jnp.float32)          # (B, 4H)
        sig = jax.nn.sigmoid(pre)                                 # one EUP sweep
        tnh = jnp.tanh(pre)                                       # one EUP sweep
        # PyTorch nn.LSTM gate order along 4H: input, forget, cell(g), output
        i_g = sig[:, 0 * H:1 * H]
        f_g = sig[:, 1 * H:2 * H]
        g_g = tnh[:, 2 * H:3 * H]
        o_g = sig[:, 3 * H:4 * H]
        c = f_g * c + i_g * g_g
        h = o_g * jnp.tanh(c)

    # Dropout(p=0.2) on ht[-1] is identity in eval mode.
    # TODO(synk): training-mode dropout (random mask + 1/0.8 scaling) not implemented.
    logits = (jnp.dot(h, wout_ref[...], preferred_element_type=jnp.float32)
              + bout_ref[...])                                    # (B, O)
    m = jnp.max(logits, axis=-1, keepdims=True)
    shifted = logits - m
    lse = jnp.log(jnp.sum(jnp.exp(shifted), axis=-1, keepdims=True))
    out_ref[...] = shifted - lse


@jax.jit
def lstm_classifier_forward(x_emb_flat, w_ih_f, w_hh_f, b_f, h0, c0, w_out_t, b_out):
    """x_emb_flat: (S*B, E) time-major embedded input, flattened over (S, B)."""
    B, H = h0.shape
    O = w_out_t.shape[-1]
    vmem = lambda: pl.BlockSpec(memory_space=pltpu.MemorySpace.VMEM)
    return pl.pallas_call(
        lstm_classifier_kernel,
        out_shape=jax.ShapeDtypeStruct((B, O), jnp.float32),
        in_specs=[vmem() for _ in range(8)],      # everything VMEM-resident, no grid
        out_specs=vmem(),
    )(x_emb_flat, w_ih_f, w_hh_f, b_f, h0, c0, w_out_t, b_out)


def reference_forward(x_emb_flat, w_ih_f, w_hh_f, b_f, h0, c0, w_out_t, b_out):
    """Pure-JAX reference of the same computation (sanity check)."""
    B, H = h0.shape
    S = x_emb_flat.shape[0] // B
    h, c = h0, c0
    for t in range(S):
        x_t = x_emb_flat[t * B:(t + 1) * B]
        pre = x_t @ w_ih_f + h @ w_hh_f + b_f
        i = jax.nn.sigmoid(pre[:, 0 * H:1 * H])
        f = jax.nn.sigmoid(pre[:, 1 * H:2 * H])
        g = jnp.tanh(pre[:, 2 * H:3 * H])
        o = jax.nn.sigmoid(pre[:, 3 * H:4 * H])
        c = f * c + i * g
        h = o * jnp.tanh(c)
    logits = h @ w_out_t + b_out
    return jax.nn.log_softmax(logits, axis=-1)


if __name__ == "__main__":
    # Small shapes consistent with the module's forward.
    batch_size = 2
    seq_len = 8
    hidden_size = 32
    embedding_length = 16
    vocab_size = 50
    output_size = 4

    key = jax.random.PRNGKey(0)
    keys = jax.random.split(key, 10)

    # Deterministic "parameters" (PyTorch layouts).
    emb_weights = jax.random.normal(keys[0], (vocab_size, embedding_length), jnp.float32)
    scale = 1.0 / jnp.sqrt(hidden_size)
    w_ih = jax.random.uniform(keys[1], (4 * hidden_size, embedding_length),
                              jnp.float32, -scale, scale)    # (4H, E), rows i,f,g,o
    w_hh = jax.random.uniform(keys[2], (4 * hidden_size, hidden_size),
                              jnp.float32, -scale, scale)    # (4H, H)
    b_ih = jax.random.uniform(keys[3], (4 * hidden_size,), jnp.float32, -scale, scale)
    b_hh = jax.random.uniform(keys[4], (4 * hidden_size,), jnp.float32, -scale, scale)
    w_out = jax.random.uniform(keys[5], (output_size, hidden_size),
                               jnp.float32, -scale, scale)   # (O, H)
    b_out = jax.random.uniform(keys[6], (output_size,), jnp.float32, -scale, scale)

    # forward() draws random h0/c0 -> deterministic surrogate here.
    h0 = jax.random.normal(keys[7], (batch_size, hidden_size), jnp.float32)
    c0 = jax.random.normal(keys[8], (batch_size, hidden_size), jnp.float32)

    # Example input sentence: (B, S) int token ids.
    input_sentence = jax.random.randint(keys[9], (batch_size, seq_len), 0, vocab_size)

    # --- glue (plain JAX): embedding lookup + permute + fused weight layout ---
    x_emb = emb_weights[input_sentence]                 # (B, S, E)
    x_emb_tm = jnp.transpose(x_emb, (1, 0, 2))          # (S, B, E) time-major
    x_emb_flat = x_emb_tm.reshape(seq_len * batch_size, embedding_length)  # (S*B, E)

    # Fused gate layout: transpose of PyTorch's stacked (4H, K) keeps the
    # i,f,g,o gate order along the 4H (lane) axis.
    w_ih_f = w_ih.T                                     # (E, 4H)
    w_hh_f = w_hh.T                                     # (H, 4H)
    b_f = (b_ih + b_hh)[None, :]                        # (1, 4H)
    w_out_t = w_out.T                                   # (H, O)
    b_out_r = b_out[None, :]                            # (1, O)

    out = lstm_classifier_forward(x_emb_flat, w_ih_f, w_hh_f, b_f,
                                  h0, c0, w_out_t, b_out_r)
    out = jax.block_until_ready(out)

    ref = reference_forward(x_emb_flat, w_ih_f, w_hh_f, b_f,
                            h0, c0, w_out_t, b_out_r)
    assert out.shape == (batch_size, output_size)
    assert jnp.allclose(out, ref, atol=2e-3, rtol=2e-3), (out, ref)

    print("KERNEL_OK")
</pallas_src>

<mosaic_0001>
module attributes {stable_mosaic.version = 11 : i64} {
  func.func @lstm_classifier_kernel(%arg0: memref<16x16xf32, #tpu.memory_space<vmem>>, %arg1: memref<16x128xf32, #tpu.memory_space<vmem>>, %arg2: memref<32x128xf32, #tpu.memory_space<vmem>>, %arg3: memref<1x128xf32, #tpu.memory_space<vmem>>, %arg4: memref<2x32xf32, #tpu.memory_space<vmem>>, %arg5: memref<2x32xf32, #tpu.memory_space<vmem>>, %arg6: memref<32x4xf32, #tpu.memory_space<vmem>>, %arg7: memref<1x4xf32, #tpu.memory_space<vmem>>, %arg8: memref<2x4xf32, #tpu.memory_space<vmem>>) attributes {dimension_semantics = [], scalar_prefetch = 0 : i64, scratch_operands = 0 : i64, tpu.core_type = #tpu.core_type<tc>} {
    %c0 = arith.constant 0 : index
    %c0_0 = arith.constant 0 : index
    %0 = vector.load %arg0[%c0, %c0_0] : memref<16x16xf32, #tpu.memory_space<vmem>>, vector<16x16xf32>
    %c0_1 = arith.constant 0 : index
    %c0_2 = arith.constant 0 : index
    %1 = vector.load %arg1[%c0_1, %c0_2] : memref<16x128xf32, #tpu.memory_space<vmem>>, vector<16x128xf32>
    %cst = arith.constant dense<0.000000e+00> : vector<16x128xf32>
    %2 = tpu.matmul %0, %1, %cst {dimension_numbers = #tpu.dot_dimension_numbers<[1], [0], [0], [1], [0, 0, 1, 1], [], []>} : vector<16x16xf32>, vector<16x128xf32>, vector<16x128xf32> -> vector<16x128xf32>
    %c0_3 = arith.constant 0 : index
    %c0_4 = arith.constant 0 : index
    %3 = vector.load %arg3[%c0_3, %c0_4] : memref<1x128xf32, #tpu.memory_space<vmem>>, vector<1x128xf32>
    %4 = vector.broadcast %3 : vector<1x128xf32> to vector<16x128xf32>
    %5 = arith.addf %2, %4 : vector<16x128xf32>
    %c0_5 = arith.constant 0 : index
    %c0_6 = arith.constant 0 : index
    %6 = vector.load %arg2[%c0_5, %c0_6] : memref<32x128xf32, #tpu.memory_space<vmem>>, vector<32x128xf32>
    %c0_7 = arith.constant 0 : index
    %c0_8 = arith.constant 0 : index
    %7 = vector.load %arg4[%c0_7, %c0_8] : memref<2x32xf32, #tpu.memory_space<vmem>>, vector<2x32xf32>
    %c0_9 = arith.constant 0 : index
    %c0_10 = arith.constant 0 : index
    %8 = vector.load %arg5[%c0_9, %c0_10] : memref<2x32xf32, #tpu.memory_space<vmem>>, vector<2x32xf32>
    %9 = vector.extract_strided_slice %5 {offsets = [0, 0], sizes = [2, 128], strides = [1, 1]} : vector<16x128xf32> to vector<2x128xf32>
    %cst_11 = arith.constant dense<0.000000e+00> : vector<2x128xf32>
    %10 = tpu.matmul %7, %6, %cst_11 {dimension_numbers = #tpu.dot_dimension_numbers<[1], [0], [0], [1], [0, 0, 1, 1], [], []>} : vector<2x32xf32>, vector<32x128xf32>, vector<2x128xf32> -> vector<2x128xf32>
    %11 = arith.addf %9, %10 : vector<2x128xf32>
    %12 = arith.negf %11 : vector<2x128xf32>
    %13 = math.exp %12 : vector<2x128xf32>
    %cst_12 = arith.constant 1.000000e+00 : f32
    %14 = vector.broadcast %cst_12 : f32 to vector<2x128xf32>
    %15 = arith.addf %14, %13 : vector<2x128xf32>
    %16 = arith.divf %14, %15 : vector<2x128xf32>
    %17 = math.tanh %11 : vector<2x128xf32>
    %18 = vector.extract_strided_slice %16 {offsets = [0, 0], sizes = [2, 32], strides = [1, 1]} : vector<2x128xf32> to vector<2x32xf32>
    %19 = vector.extract_strided_slice %16 {offsets = [0, 32], sizes = [2, 32], strides = [1, 1]} : vector<2x128xf32> to vector<2x32xf32>
    %20 = vector.extract_strided_slice %17 {offsets = [0, 64], sizes = [2, 32], strides = [1, 1]} : vector<2x128xf32> to vector<2x32xf32>
    %21 = vector.extract_strided_slice %16 {offsets = [0, 96], sizes = [2, 32], strides = [1, 1]} : vector<2x128xf32> to vector<2x32xf32>
    %22 = arith.mulf %19, %8 : vector<2x32xf32>
    %23 = arith.mulf %18, %20 : vector<2x32xf32>
    %24 = arith.addf %22, %23 : vector<2x32xf32>
    %25 = math.tanh %24 : vector<2x32xf32>
    %26 = arith.mulf %21, %25 : vector<2x32xf32>
    %27 = vector.extract_strided_slice %5 {offsets = [2, 0], sizes = [2, 128], strides = [1, 1]} : vector<16x128xf32> to vector<2x128xf32>
    %cst_13 = arith.constant dense<0.000000e+00> : vector<2x128xf32>
    %28 = tpu.matmul %26, %6, %cst_13 {dimension_numbers = #tpu.dot_dimension_numbers<[1], [0], [0], [1], [0, 0, 1, 1], [], []>} : vector<2x32xf32>, vector<32x128xf32>, vector<2x128xf32> -> vector<2x128xf32>
    %29 = arith.addf %27, %28 : vector<2x128xf32>
    %30 = arith.negf %29 : vector<2x128xf32>
    %31 = math.exp %30 : vector<2x128xf32>
    %cst_14 = arith.constant 1.000000e+00 : f32
    %32 = vector.broadcast %cst_14 : f32 to vector<2x128xf32>
    %33 = arith.addf %32, %31 : vector<2x128xf32>
    %34 = arith.divf %32, %33 : vector<2x128xf32>
    %35 = math.tanh %29 : vector<2x128xf32>
    %36 = vector.extract_strided_slice %34 {offsets = [0, 0], sizes = [2, 32], strides = [1, 1]} : vector<2x128xf32> to vector<2x32xf32>
    %37 = vector.extract_strided_slice %34 {offsets = [0, 32], sizes = [2, 32], strides = [1, 1]} : vector<2x128xf32> to vector<2x32xf32>
    %38 = vector.extract_strided_slice %35 {offsets = [0, 64], sizes = [2, 32], strides = [1, 1]} : vector<2x128xf32> to vector<2x32xf32>
    %39 = vector.extract_strided_slice %34 {offsets = [0, 96], sizes = [2, 32], strides = [1, 1]} : vector<2x128xf32> to vector<2x32xf32>
    %40 = arith.mulf %37, %24 : vector<2x32xf32>
    %41 = arith.mulf %36, %38 : vector<2x32xf32>
    %42 = arith.addf %40, %41 : vector<2x32xf32>
    %43 = math.tanh %42 : vector<2x32xf32>
    %44 = arith.mulf %39, %43 : vector<2x32xf32>
    %45 = vector.extract_strided_slice %5 {offsets = [4, 0], sizes = [2, 128], strides = [1, 1]} : vector<16x128xf32> to vector<2x128xf32>
    %cst_15 = arith.constant dense<0.000000e+00> : vector<2x128xf32>
    %46 = tpu.matmul %44, %6, %cst_15 {dimension_numbers = #tpu.dot_dimension_numbers<[1], [0], [0], [1], [0, 0, 1, 1], [], []>} : vector<2x32xf32>, vector<32x128xf32>, vector<2x128xf32> -> vector<2x128xf32>
    %47 = arith.addf %45, %46 : vector<2x128xf32>
    %48 = arith.negf %47 : vector<2x128xf32>
    %49 = math.exp %48 : vector<2x128xf32>
    %cst_16 = arith.constant 1.000000e+00 : f32
    %50 = vector.broadcast %cst_16 : f32 to vector<2x128xf32>
    %51 = arith.addf %50, %49 : vector<2x128xf32>
    %52 = arith.divf %50, %51 : vector<2x128xf32>
    %53 = math.tanh %47 : vector<2x128xf32>
    %54 = vector.extract_strided_slice %52 {offsets = [0, 0], sizes = [2, 32], strides = [1, 1]} : vector<2x128xf32> to vector<2x32xf32>
    %55 = vector.extract_strided_slice %52 {offsets = [0, 32], sizes = [2, 32], strides = [1, 1]} : vector<2x128xf32> to vector<2x32xf32>
    %56 = vector.extract_strided_slice %53 {offsets = [0, 64], sizes = [2, 32], strides = [1, 1]} : vector<2x128xf32> to vector<2x32xf32>
    %57 = vector.extract_strided_slice %52 {offsets = [0, 96], sizes = [2, 32], strides = [1, 1]} : vector<2x128xf32> to vector<2x32xf32>
    %58 = arith.mulf %55, %42 : vector<2x32xf32>
    %59 = arith.mulf %54, %56 : vector<2x32xf32>
    %60 = arith.addf %58, %59 : vector<2x32xf32>
    %61 = math.tanh %60 : vector<2x32xf32>
    %62 = arith.mulf %57, %61 : vector<2x32xf32>
    %63 = vector.extract_strided_slice %5 {offsets = [6, 0], sizes = [2, 128], strides = [1, 1]} : vector<16x128xf32> to vector<2x128xf32>
    %cst_17 = arith.constant dense<0.000000e+00> : vector<2x128xf32>
    %64 = tpu.matmul %62, %6, %cst_17 {dimension_numbers = #tpu.dot_dimension_numbers<[1], [0], [0], [1], [0, 0, 1, 1], [], []>} : vector<2x32xf32>, vector<32x128xf32>, vector<2x128xf32> -> vector<2x128xf32>
    %65 = arith.addf %63, %64 : vector<2x128xf32>
    %66 = arith.negf %65 : vector<2x128xf32>
    %67 = math.exp %66 : vector<2x128xf32>
    %cst_18 = arith.constant 1.000000e+00 : f32
    %68 = vector.broadcast %cst_18 : f32 to vector<2x128xf32>
    %69 = arith.addf %68, %67 : vector<2x128xf32>
    %70 = arith.divf %68, %69 : vector<2x128xf32>
    %71 = math.tanh %65 : vector<2x128xf32>
    %72 = vector.extract_strided_slice %70 {offsets = [0, 0], sizes = [2, 32], strides = [1, 1]} : vector<2x128xf32> to vector<2x32xf32>
    %73 = vector.extract_strided_slice %70 {offsets = [0, 32], sizes = [2, 32], strides = [1, 1]} : vector<2x128xf32> to vector<2x32xf32>
    %74 = vector.extract_strided_slice %71 {offsets = [0, 64], sizes = [2, 32], strides = [1, 1]} : vector<2x128xf32> to vector<2x32xf32>
    %75 = vector.extract_strided_slice %70 {offsets = [0, 96], sizes = [2, 32], strides = [1, 1]} : vector<2x128xf32> to vector<2x32xf32>
    %76 = arith.mulf %73, %60 : vector<2x32xf32>
    %77 = arith.mulf %72, %74 : vector<2x32xf32>
    %78 = arith.addf %76, %77 : vector<2x32xf32>
    %79 = math.tanh %78 : vector<2x32xf32>
    %80 = arith.mulf %75, %79 : vector<2x32xf32>
    %81 = vector.extract_strided_slice %5 {offsets = [8, 0], sizes = [2, 128], strides = [1, 1]} : vector<16x128xf32> to vector<2x128xf32>
    %cst_19 = arith.constant dense<0.000000e+00> : vector<2x128xf32>
    %82 = tpu.matmul %80, %6, %cst_19 {dimension_numbers = #tpu.dot_dimension_numbers<[1], [0], [0], [1], [0, 0, 1, 1], [], []>} : vector<2x32xf32>, vector<32x128xf32>, vector<2x128xf32> -> vector<2x128xf32>
    %83 = arith.addf %81, %82 : vector<2x128xf32>
    %84 = arith.negf %83 : vector<2x128xf32>
    %85 = math.exp %84 : vector<2x128xf32>
    %cst_20 = arith.constant 1.000000e+00 : f32
    %86 = vector.broadcast %cst_20 : f32 to vector<2x128xf32>
    %87 = arith.addf %86, %85 : vector<2x128xf32>
    %88 = arith.divf %86, %87 : vector<2x128xf32>
    %89 = math.tanh %83 : vector<2x128xf32>
    %90 = vector.extract_strided_slice %88 {offsets = [0, 0], sizes = [2, 32], strides = [1, 1]} : vector<2x128xf32> to vector<2x32xf32>
    %91 = vector.extract_strided_slice %88 {offsets = [0, 32], sizes = [2, 32], strides = [1, 1]} : vector<2x128xf32> to vector<2x32xf32>
    %92 = vector.extract_strided_slice %89 {offsets = [0, 64], sizes = [2, 32], strides = [1, 1]} : vector<2x128xf32> to vector<2x32xf32>
    %93 = vector.extract_strided_slice %88 {offsets = [0, 96], sizes = [2, 32], strides = [1, 1]} : vector<2x128xf32> to vector<2x32xf32>
    %94 = arith.mulf %91, %78 : vector<2x32xf32>
    %95 = arith.mulf %90, %92 : vector<2x32xf32>
    %96 = arith.addf %94, %95 : vector<2x32xf32>
    %97 = math.tanh %96 : vector<2x32xf32>
    %98 = arith.mulf %93, %97 : vector<2x32xf32>
    %99 = vector.extract_strided_slice %5 {offsets = [10, 0], sizes = [2, 128], strides = [1, 1]} : vector<16x128xf32> to vector<2x128xf32>
    %cst_21 = arith.constant dense<0.000000e+00> : vector<2x128xf32>
    %100 = tpu.matmul %98, %6, %cst_21 {dimension_numbers = #tpu.dot_dimension_numbers<[1], [0], [0], [1], [0, 0, 1, 1], [], []>} : vector<2x32xf32>, vector<32x128xf32>, vector<2x128xf32> -> vector<2x128xf32>
    %101 = arith.addf %99, %100 : vector<2x128xf32>
    %102 = arith.negf %101 : vector<2x128xf32>
    %103 = math.exp %102 : vector<2x128xf32>
    %cst_22 = arith.constant 1.000000e+00 : f32
    %104 = vector.broadcast %cst_22 : f32 to vector<2x128xf32>
    %105 = arith.addf %104, %103 : vector<2x128xf32>
    %106 = arith.divf %104, %105 : vector<2x128xf32>
    %107 = math.tanh %101 : vector<2x128xf32>
    %108 = vector.extract_strided_slice %106 {offsets = [0, 0], sizes = [2, 32], strides = [1, 1]} : vector<2x128xf32> to vector<2x32xf32>
    %109 = vector.extract_strided_slice %106 {offsets = [0, 32], sizes = [2, 32], strides = [1, 1]} : vector<2x128xf32> to vector<2x32xf32>
    %110 = vector.extract_strided_slice %107 {offsets = [0, 64], sizes = [2, 32], strides = [1, 1]} : vector<2x128xf32> to vector<2x32xf32>
    %111 = vector.extract_strided_slice %106 {offsets = [0, 96], sizes = [2, 32], strides = [1, 1]} : vector<2x128xf32> to vector<2x32xf32>
    %112 = arith.mulf %109, %96 : vector<2x32xf32>
    %113 = arith.mulf %108, %110 : vector<2x32xf32>
    %114 = arith.addf %112, %113 : vector<2x32xf32>
    %115 = math.tanh %114 : vector<2x32xf32>
    %116 = arith.mulf %111, %115 : vector<2x32xf32>
    %117 = vector.extract_strided_slice %5 {offsets = [12, 0], sizes = [2, 128], strides = [1, 1]} : vector<16x128xf32> to vector<2x128xf32>
    %cst_23 = arith.constant dense<0.000000e+00> : vector<2x128xf32>
    %118 = tpu.matmul %116, %6, %cst_23 {dimension_numbers = #tpu.dot_dimension_numbers<[1], [0], [0], [1], [0, 0, 1, 1], [], []>} : vector<2x32xf32>, vector<32x128xf32>, vector<2x128xf32> -> vector<2x128xf32>
    %119 = arith.addf %117, %118 : vector<2x128xf32>
    %120 = arith.negf %119 : vector<2x128xf32>
    %121 = math.exp %120 : vector<2x128xf32>
    %cst_24 = arith.constant 1.000000e+00 : f32
    %122 = vector.broadcast %cst_24 : f32 to vector<2x128xf32>
    %123 = arith.addf %122, %121 : vector<2x128xf32>
    %124 = arith.divf %122, %123 : vector<2x128xf32>
    %125 = math.tanh %119 : vector<2x128xf32>
    %126 = vector.extract_strided_slice %124 {offsets = [0, 0], sizes = [2, 32], strides = [1, 1]} : vector<2x128xf32> to vector<2x32xf32>
    %127 = vector.extract_strided_slice %124 {offsets = [0, 32], sizes = [2, 32], strides = [1, 1]} : vector<2x128xf32> to vector<2x32xf32>
    %128 = vector.extract_strided_slice %125 {offsets = [0, 64], sizes = [2, 32], strides = [1, 1]} : vector<2x128xf32> to vector<2x32xf32>
    %129 = vector.extract_strided_slice %124 {offsets = [0, 96], sizes = [2, 32], strides = [1, 1]} : vector<2x128xf32> to vector<2x32xf32>
    %130 = arith.mulf %127, %114 : vector<2x32xf32>
    %131 = arith.mulf %126, %128 : vector<2x32xf32>
    %132 = arith.addf %130, %131 : vector<2x32xf32>
    %133 = math.tanh %132 : vector<2x32xf32>
    %134 = arith.mulf %129, %133 : vector<2x32xf32>
    %135 = vector.extract_strided_slice %5 {offsets = [14, 0], sizes = [2, 128], strides = [1, 1]} : vector<16x128xf32> to vector<2x128xf32>
    %cst_25 = arith.constant dense<0.000000e+00> : vector<2x128xf32>
    %136 = tpu.matmul %134, %6, %cst_25 {dimension_numbers = #tpu.dot_dimension_numbers<[1], [0], [0], [1], [0, 0, 1, 1], [], []>} : vector<2x32xf32>, vector<32x128xf32>, vector<2x128xf32> -> vector<2x128xf32>
    %137 = arith.addf %135, %136 : vector<2x128xf32>
    %138 = arith.negf %137 : vector<2x128xf32>
    %139 = math.exp %138 : vector<2x128xf32>
    %cst_26 = arith.constant 1.000000e+00 : f32
    %140 = vector.broadcast %cst_26 : f32 to vector<2x128xf32>
    %141 = arith.addf %140, %139 : vector<2x128xf32>
    %142 = arith.divf %140, %141 : vector<2x128xf32>
    %143 = math.tanh %137 : vector<2x128xf32>
    %144 = vector.extract_strided_slice %142 {offsets = [0, 0], sizes = [2, 32], strides = [1, 1]} : vector<2x128xf32> to vector<2x32xf32>
    %145 = vector.extract_strided_slice %142 {offsets = [0, 32], sizes = [2, 32], strides = [1, 1]} : vector<2x128xf32> to vector<2x32xf32>
    %146 = vector.extract_strided_slice %143 {offsets = [0, 64], sizes = [2, 32], strides = [1, 1]} : vector<2x128xf32> to vector<2x32xf32>
    %147 = vector.extract_strided_slice %142 {offsets = [0, 96], sizes = [2, 32], strides = [1, 1]} : vector<2x128xf32> to vector<2x32xf32>
    %148 = arith.mulf %145, %132 : vector<2x32xf32>
    %149 = arith.mulf %144, %146 : vector<2x32xf32>
    %150 = arith.addf %148, %149 : vector<2x32xf32>
    %151 = math.tanh %150 : vector<2x32xf32>
    %152 = arith.mulf %147, %151 : vector<2x32xf32>
    %c0_27 = arith.constant 0 : index
    %c0_28 = arith.constant 0 : index
    %153 = vector.load %arg6[%c0_27, %c0_28] : memref<32x4xf32, #tpu.memory_space<vmem>>, vector<32x4xf32>
    %cst_29 = arith.constant dense<0.000000e+00> : vector<2x4xf32>
    %154 = tpu.matmul %152, %153, %cst_29 {dimension_numbers = #tpu.dot_dimension_numbers<[1], [0], [0], [1], [0, 0, 1, 1], [], []>} : vector<2x32xf32>, vector<32x4xf32>, vector<2x4xf32> -> vector<2x4xf32>
    %c0_30 = arith.constant 0 : index
    %c0_31 = arith.constant 0 : index
    %155 = vector.load %arg7[%c0_30, %c0_31] : memref<1x4xf32, #tpu.memory_space<vmem>>, vector<1x4xf32>
    %156 = vector.broadcast %155 : vector<1x4xf32> to vector<2x4xf32>
    %157 = arith.addf %154, %156 : vector<2x4xf32>
    %cst_32 = arith.constant dense<0xFF800000> : vector<2xf32>
    %158 = vector.multi_reduction <maximumf>, %157, %cst_32 [1] : vector<2x4xf32> to vector<2xf32>
    %159 = vector.shape_cast %158 : vector<2xf32> to vector<2x1xf32>
    %160 = vector.broadcast %159 : vector<2x1xf32> to vector<2x4xf32>
    %161 = arith.subf %157, %160 : vector<2x4xf32>
    %162 = math.exp %161 : vector<2x4xf32>
    %cst_33 = arith.constant dense<0.000000e+00> : vector<2xf32>
    %163 = vector.multi_reduction <add>, %162, %cst_33 [1] : vector<2x4xf32> to vector<2xf32>
    %164 = vector.shape_cast %163 : vector<2xf32> to vector<2x1xf32>
    %165 = math.log %164 : vector<2x1xf32>
    %166 = vector.broadcast %165 : vector<2x1xf32> to vector<2x4xf32>
    %167 = arith.subf %161, %166 : vector<2x4xf32>
    %c0_34 = arith.constant 0 : index
    %c0_35 = arith.constant 0 : index
    %168 = vector.load %arg8[%c0_34, %c0_35] : memref<2x4xf32, #tpu.memory_space<vmem>>, vector<2x4xf32>
    tpu.vector_store %arg8[%c0_34, %c0_35], %167 {strides = array<i32>} : memref<2x4xf32, #tpu.memory_space<vmem>>, vector<2x4xf32>,
    return
  }
}

</mosaic_0001>

<llo_original>
// kernel: lstm_classifier_forward.1
$region0: #{lstm_classifier_forward.1}
  #allocation0 [shape = 'u32[]', space=smem, size = 0x4, offset = 0x4, fixed_abs, tag = 'smem constant byte address 0x4 - core index']
  #allocation1 [shape = 'u32[72,128]{1,0:T(1,128)}', space=vmem, size = 0x9000, scoped, tag = 'internal scratch']
  %s0 = inlined_call_operand.hbm [shape: f32[16,16], index: 0, kind: input, shape index: {}]
  %s1 = inlined_call_operand.hbm [shape: f32[16,128], index: 1, kind: input, shape index: {}]
  %s2 = inlined_call_operand.vmem [shape: f32[32,128], index: 2, kind: input, shape index: {}]
  %s3 = inlined_call_operand.vmem [shape: f32[1,128], index: 3, kind: input, shape index: {}]
  %s4 = inlined_call_operand.vmem [shape: f32[2,32], index: 4, kind: input, shape index: {}]
  %s5 = inlined_call_operand.vmem [shape: f32[2,32], index: 5, kind: input, shape index: {}]
  %s6 = inlined_call_operand.vmem [shape: f32[32,4], index: 6, kind: input, shape index: {}]
  %s7 = inlined_call_operand.vmem [shape: f32[1,4], index: 7, kind: input, shape index: {}]
  %s8 = inlined_call_operand.hbm [shape: f32[2,4], index: 8, kind: output, shape index: {}]
  %s9 = sld [smem:[#allocation0]]
  $region50: #{lstm_classifier_forward.1} parent=0
    _
  %s11 = ssub.s32 1, %s9
  %s12 = scalar_select 0, %s11, %s9
  $region1: #{lstm_classifier_forward.1} parent=0
    #allocation2 [shape = 'u8[8192]{0}', space=vmem, size = 0x2000, scoped, tag = 'input window, operand 0, single buffered']
    #allocation3 [shape = 's32[1]{0}', space=sflag, size = 0x4, scoped, tag = 'scoped memory for lstm_classifier_forward.1']
    #allocation4 [shape = 's32[1]{0}', space=sflag, size = 0x4, scoped, tag = 'scoped memory for lstm_classifier_forward.1']
    #allocation5 [shape = 'u8[8192]{0}', space=vmem, size = 0x2000, scoped, tag = 'input window, operand 1, single buffered']
    #allocation6 [shape = 's32[1]{0}', space=sflag, size = 0x4, scoped, tag = 'scoped memory for lstm_classifier_forward.1']
    #allocation7 [shape = 'u8[1024]{0}', space=vmem, size = 0x400, scoped, tag = 'output window, operand 0, single buffered']
    %13 = vsyncpa [#allocation3], 0
    %14 = vsyncpa [#allocation6], 0
    %15 = vsyncpa [#allocation4], 0
    // Predicated region
    $region2: #{lstm_classifier_forward.1} parent=1 // pred_check
      _
    $region3: #{lstm_classifier_forward.1} parent=1 // pred_check_branch
      %17 = sbr.rel (0) target = $region5
    $region4: #{lstm_classifier_forward.1} parent=1 // pred_region
      %19 = vsyncadd [#allocation3], 0
      %s20 = sshll.u32 %s0, 4
      %s21 = int_to_ptr.hbm [resolvable:$true] %s20
      %s22 = sshll.u32 [#allocation2], 4
      %s23 = int_to_ptr.vmem [resolvable:$true] %s22
      %28 = dma.hbm_to_vmem [thread:$0]  %s21, 256, %s23, [#allocation3], 128, 128, 8
    $region5: #{lstm_classifier_forward.1} parent=1 // pred_fallthru
      _
    // Predicated region
    $region6: #{lstm_classifier_forward.1} parent=1 // pred_check
      _
    $region7: #{lstm_classifier_forward.1} parent=1 // pred_check_branch
      %30 = sbr.rel (0) target = $region9
    $region8: #{lstm_classifier_forward.1} parent=1 // pred_region
      %32 = vsyncadd [#allocation6], 0
      %s33 = sshll.u32 %s1, 4
      %s34 = int_to_ptr.hbm [resolvable:$true] %s33
      %s35 = sshll.u32 [#allocation5], 4
      %s36 = int_to_ptr.vmem [resolvable:$true] %s35
      %41 = dma.hbm_to_vmem [thread:$0]  %s34, 256, %s36, [#allocation6], 128, 128, 8
    $region9: #{lstm_classifier_forward.1} parent=1 // pred_fallthru
      _
    // Predicated region
    $region10: #{lstm_classifier_forward.1} parent=1 // pred_check
      _
    $region11: #{lstm_classifier_forward.1} parent=1 // pred_check_branch
      %43 = sbr.rel (0) target = $region13
    $region12: #{lstm_classifier_forward.1} parent=1 // pred_region
      _
    $region13: #{lstm_classifier_forward.1} parent=1 // pred_fallthru
      _
    // Predicated region
    $region14: #{lstm_classifier_forward.1} parent=1 // pred_check
      _
    $region15: #{lstm_classifier_forward.1} parent=1 // pred_check_branch
      %45 = sbr.rel (0) target = $region17
    $region16: #{lstm_classifier_forward.1} parent=1 // pred_region
      _
    $region17: #{lstm_classifier_forward.1} parent=1 // pred_fallthru
      _
    // Predicated region
    $region18: #{lstm_classifier_forward.1} parent=1 // pred_check
      _
    $region19: #{lstm_classifier_forward.1} parent=1 // pred_check_branch
      %47 = sbr.rel (0) target = $region21
    $region20: #{lstm_classifier_forward.1} parent=1 // pred_region
      _
    $region21: #{lstm_classifier_forward.1} parent=1 // pred_fallthru
      _
    // Predicated region
    $region22: #{lstm_classifier_forward.1} parent=1 // pred_check
      _
    $region23: #{lstm_classifier_forward.1} parent=1 // pred_check_branch
      %49 = sbr.rel (0) target = $region25
    $region24: #{lstm_classifier_forward.1} parent=1 // pred_region
      _
    $region25: #{lstm_classifier_forward.1} parent=1 // pred_fallthru
      _
    // Predicated region
    $region26: #{lstm_classifier_forward.1} parent=1 // pred_check
      _
    $region27: #{lstm_classifier_forward.1} parent=1 // pred_check_branch
      %51 = sbr.rel (0) target = $region29
    $region28: #{lstm_classifier_forward.1} parent=1 // pred_region
      _
    $region29: #{lstm_classifier_forward.1} parent=1 // pred_fallthru
      _
    // Predicated region
    $region30: #{lstm_classifier_forward.1} parent=1 // pred_check
      _
    $region31: #{lstm_classifier_forward.1} parent=1 // pred_check_branch
      %53 = sbr.rel (0) target = $region33
    $region32: #{lstm_classifier_forward.1} parent=1 // pred_region
      _
    $region33: #{lstm_classifier_forward.1} parent=1 // pred_fallthru
      _
    // Predicated region
    $region34: #{lstm_classifier_forward.1} parent=1 // pred_check
      _
    $region35: #{lstm_classifier_forward.1} parent=1 // pred_check_branch
      %55 = sbr.rel (0) target = $region37
    $region36: #{lstm_classifier_forward.1} parent=1 // pred_region
      %57 = dma.done [#allocation3], 256
    $region37: #{lstm_classifier_forward.1} parent=1 // pred_fallthru
      _
    // Predicated region
    $region38: #{lstm_classifier_forward.1} parent=1 // pred_check
      _
    $region39: #{lstm_classifier_forward.1} parent=1 // pred_check_branch
      %59 = sbr.rel (0) target = $region41
    $region40: #{lstm_classifier_forward.1} parent=1 // pred_region
      %61 = dma.done [#allocation6], 256
    $region41: #{lstm_classifier_forward.1} parent=1 // pred_fallthru
      _
    %v62 = vld [vmem:[#allocation2] sm:$0xff]
    %v63 = vld [vmem:[#allocation2 + $0x8] sm:$0xff]
    %v64 = vld [vmem:[#allocation5] sm:$0xff]
    %v65 = vld [vmem:[#allocation5 + $0x8] sm:$0xff]
    %v66 = vld [vmem:[%s3] sm:$0x1]
    %v68 = vperm.slane %v66, 0
    %vm70 = vcmask 130048
    %v72 = vsel %vm70, %v62, 0
    %v75 = vsel %vm70, %v63, 0
    %77 = vmatpush.msra.mxu0 0.0
    %78 = vmatpush.msra.mxu0 0.0
    %79 = vmatpush.msra.mxu0 0.0
    %80 = vmatpush.msra.mxu0 0.0
    %81 = vmatpush.msra.mxu0 0.0
    %82 = vmatpush.msra.mxu0 0.0
    %83 = vmatpush.msra.mxu0 0.0
    %84 = vmatpush.msra.mxu0 0.0
    %85 = vmatpush.msra.mxu0 0.0
    %86 = vmatpush.msra.mxu0 0.0
    %87 = vmatpush.msra.mxu0 0.0
    %88 = vmatpush.msra.mxu0 0.0
    %89 = vmatpush.msra.mxu0 0.0
    %90 = vmatpush.msra.mxu0 0.0
    %91 = vmatpush.msra.mxu0 %v65
    %92 = vmatpush.msra.mxu0 %v64
    %93 = vmatmul.f32.gmra.mxu0 %v72
    %v94 = vpop.f32.mrf.mxu0
    %v95 = vadd.f32 %v68, %v94
    %96 = vmatmul.f32.gmra.mxu0 %v75
    %v97 = vpop.f32.mrf.mxu0
    %v98 = vadd.f32 %v68, %v97
    %99 = vdwg.mxu0
    %v100 = vld [vmem:[%s2] sm:$0xff]
    %v101 = vld [vmem:[%s2 + $0x8] sm:$0xff]
    %v102 = vld [vmem:[%s2 + $0x10] sm:$0xff]
    %v103 = vld [vmem:[%s2 + $0x18] sm:$0xff]
    %v104 = vld [vmem:[%s4] sm:$0x3]
    %v105 = vld [vmem:[%s5] sm:$0x3]
    %vm106 = vcmask 261120
    %v108 = vsel %vm106, %v104, 0
    %110 = vmatpush.msra.mxu0 0.0
    %111 = vmatpush.msra.mxu0 0.0
    %112 = vmatpush.msra.mxu0 0.0
    %113 = vmatpush.msra.mxu0 0.0
    %114 = vmatpush.msra.mxu0 0.0
    %115 = vmatpush.msra.mxu0 0.0
    %116 = vmatpush.msra.mxu0 0.0
    %117 = vmatpush.msra.mxu0 0.0
    %118 = vmatpush.msra.mxu0 0.0
    %119 = vmatpush.msra.mxu0 0.0
    %120 = vmatpush.msra.mxu0 0.0
    %121 = vmatpush.msra.mxu0 0.0
    %122 = vmatpush.msra.mxu0 %v103
    %123 = vmatpush.msra.mxu0 %v102
    %124 = vmatpush.msra.mxu0 %v101
    %125 = vmatpush.msra.mxu0 %v100
    %126 = vmatmul.f32.gmra.mxu0 %v108
    %v127 = vpop.f32.mrf.mxu0
    %v128 = vadd.f32 0.0, %v127
    %129 = vdwg.mxu0
    %v130 = vadd.f32 %v95, %v128
    %v131 = vxor.u32 %v130, 2147483648
    %v132 = vmul.f32 %v131, 1.442695
    %v133 = vpow.pop %v132
    %v134 = vadd.f32 %v133, 1.0
    %v135 = vrcp.pop %v134
    %v136 = vmul.f32 %v134, %v135
    %v137 = vsub.f32 1.0, %v136
    %v138 = vmul.f32 %v135, %v137
    %v139 = vadd.f32 %v135, %v138
    %vm140 = vweird.f32 %v134
    %vm141 = vweird.f32 %v135
    %vm142 = vmor %vm140, %vm141
    %v143 = vsel %vm142, %v135, %v139
    %v144 = vand.u32 2147483647, %v134
    %vm145 = vcmp.eq.f32.partialorder %v144, 8.507059e+37
    %v146 = vand.u32 %v134, 2147483648
    %v147 = vor.u32 1.1754944e-38, %v146
    %v148 = vsel %vm145, %v147, %v143
    %v149 = vmul.f32 1.0, %v148
    %v150 = vtanh.pop %v130
    %152 = vrot.lane.b32.xlu0 %v105, 32
    %v153 = vpop.permute.xlu0 %152
    %v155 = vmul.f32 %v149, %v153
    %157 = vrot.lane.b32.xlu0 %v150, 64
    %v158 = vpop.permute.xlu0 %157
    %v160 = vmul.f32 %v149, %v158
    %162 = vrot.lane.b32.xlu0 %v160, 32
    %v163 = vpop.permute.xlu0 %162
    %v165 = vadd.f32 %v155, %v163
    %v166 = vtanh.pop %v165
    %168 = vrot.lane.b32.xlu0 %v166, 64
    %v169 = vpop.permute.xlu0 %168
    %v171 = vmul.f32 %v149, %v169
    %173 = vrot.lane.b32.xlu0 %v171, 32
    %v174 = vpop.permute.xlu0 %173
    %v175 = vsel %vm106, %v174, 0
    %177 = vmatpush.msra.mxu0 0.0
    %178 = vmatpush.msra.mxu0 0.0
    %179 = vmatpush.msra.mxu0 0.0
    %180 = vmatpush.msra.mxu0 0.0
    %181 = vmatpush.msra.mxu0 0.0
    %182 = vmatpush.msra.mxu0 0.0
    %183 = vmatpush.msra.mxu0 0.0
    %184 = vmatpush.msra.mxu0 0.0
    %185 = vmatpush.msra.mxu0 0.0
    %186 = vmatpush.msra.mxu0 0.0
    %187 = vmatpush.msra.mxu0 0.0
    %188 = vmatpush.msra.mxu0 0.0
    %189 = vmatpush.msra.mxu0 %v103
    %190 = vmatpush.msra.mxu0 %v102
    %191 = vmatpush.msra.mxu0 %v101
    %192 = vmatpush.msra.mxu0 %v100
    %193 = vmatmul.f32.gmra.mxu0 %v175
    %v194 = vpop.f32.mrf.mxu0
    %v195 = vadd.f32 0.0, %v194
    %196 = vdwg.mxu0
    %v198 = vrot.slane %v195, 6
    %v200 = vadd.f32 %v95, %v198
    %v201 = vxor.u32 %v200, 2147483648
    %v202 = vmul.f32 %v201, 1.442695
    %v203 = vpow.pop %v202
    %v204 = vadd.f32 %v203, 1.0
    %v205 = vrcp.pop %v204
    %v206 = vmul.f32 %v204, %v205
    %v207 = vsub.f32 1.0, %v206
    %v208 = vmul.f32 %v205, %v207
    %v209 = vadd.f32 %v205, %v208
    %vm210 = vweird.f32 %v204
    %vm211 = vweird.f32 %v205
    %vm212 = vmor %vm210, %vm211
    %v213 = vsel %vm212, %v205, %v209
    %v214 = vand.u32 2147483647, %v204
    %vm215 = vcmp.eq.f32.partialorder %v214, 8.507059e+37
    %v216 = vand.u32 %v204, 2147483648
    %v217 = vor.u32 1.1754944e-38, %v216
    %v218 = vsel %vm215, %v217, %v213
    %v219 = vmul.f32 1.0, %v218
    %v220 = vtanh.pop %v200
    %v222 = vrot.slane %v165, 6
    %v224 = vmul.f32 %v219, %v222
    %226 = vrot.lane.b32.xlu0 %v220, 64
    %v227 = vpop.permute.xlu0 %226
    %v229 = vmul.f32 %v219, %v227
    %231 = vrot.lane.b32.xlu0 %v229, 32
    %v232 = vpop.permute.xlu0 %231
    %v234 = vadd.f32 %v224, %v232
    %v235 = vtanh.pop %v234
    %237 = vrot.lane.b32.xlu0 %v235, 64
    %v238 = vpop.permute.xlu0 %237
    %v240 = vmul.f32 %v219, %v238
    %v242 = vrot.slane %v240, 2
    %243 = vrot.lane.b32.xlu0 %v242, 32
    %v244 = vpop.permute.xlu0 %243
    %v245 = vsel %vm106, %v244, 0
    %247 = vmatpush.msra.mxu0 0.0
    %248 = vmatpush.msra.mxu0 0.0
    %249 = vmatpush.msra.mxu0 0.0
    %250 = vmatpush.msra.mxu0 0.0
    %251 = vmatpush.msra.mxu0 0.0
    %252 = vmatpush.msra.mxu0 0.0
    %253 = vmatpush.msra.mxu0 0.0
    %254 = vmatpush.msra.mxu0 0.0
    %255 = vmatpush.msra.mxu0 0.0
    %256 = vmatpush.msra.mxu0 0.0
    %257 = vmatpush.msra.mxu0 0.0
    %258 = vmatpush.msra.mxu0 0.0
    %259 = vmatpush.msra.mxu0 %v103
    %260 = vmatpush.msra.mxu0 %v102
    %261 = vmatpush.msra.mxu0 %v101
    %262 = vmatpush.msra.mxu0 %v100
    %263 = vmatmul.f32.gmra.mxu0 %v245
    %v264 = vpop.f32.mrf.mxu0
    %v265 = vadd.f32 0.0, %v264
    %266 = vdwg.mxu0
    %v268 = vrot.slane %v265, 4
    %v270 = vadd.f32 %v95, %v268
    %v271 = vxor.u32 %v270, 2147483648
    %v272 = vmul.f32 %v271, 1.442695
    %v273 = vpow.pop %v272
    %v274 = vadd.f32 %v273, 1.0
    %v275 = vrcp.pop %v274
    %v276 = vmul.f32 %v274, %v275
    %v277 = vsub.f32 1.0, %v276
    %v278 = vmul.f32 %v275, %v277
    %v279 = vadd.f32 %v275, %v278
    %vm280 = vweird.f32 %v274
    %vm281 = vweird.f32 %v275
    %vm282 = vmor %vm280, %vm281
    %v283 = vsel %vm282, %v275, %v279
    %v284 = vand.u32 2147483647, %v274
    %vm285 = vcmp.eq.f32.partialorder %v284, 8.507059e+37
    %v286 = vand.u32 %v274, 2147483648
    %v287 = vor.u32 1.1754944e-38, %v286
    %v288 = vsel %vm285, %v287, %v283
    %v289 = vmul.f32 1.0, %v288
    %v290 = vtanh.pop %v270
    %v292 = vrot.slane %v234, 6
    %v294 = vmul.f32 %v289, %v292
    %296 = vrot.lane.b32.xlu0 %v290, 64
    %v297 = vpop.permute.xlu0 %296
    %v299 = vmul.f32 %v289, %v297
    %301 = vrot.lane.b32.xlu0 %v299, 32
    %v302 = vpop.permute.xlu0 %301
    %v304 = vadd.f32 %v294, %v302
    %v305 = vtanh.pop %v304
    %307 = vrot.lane.b32.xlu0 %v305, 64
    %v308 = vpop.permute.xlu0 %307
    %v310 = vmul.f32 %v289, %v308
    %v312 = vrot.slane %v310, 4
    %313 = vrot.lane.b32.xlu0 %v312, 32
    %v314 = vpop.permute.xlu0 %313
    %v315 = vsel %vm106, %v314, 0
    %317 = vmatpush.msra.mxu0 0.0
    %318 = vmatpush.msra.mxu0 0.0
    %319 = vmatpush.msra.mxu0 0.0
    %320 = vmatpush.msra.mxu0 0.0
    %321 = vmatpush.msra.mxu0 0.0
    %322 = vmatpush.msra.mxu0 0.0
    %323 = vmatpush.msra.mxu0 0.0
    %324 = vmatpush.msra.mxu0 0.0
    %325 = vmatpush.msra.mxu0 0.0
    %326 = vmatpush.msra.mxu0 0.0
    %327 = vmatpush.msra.mxu0 0.0
    %328 = vmatpush.msra.mxu0 0.0
    %329 = vmatpush.msra.mxu0 %v103
    %330 = vmatpush.msra.mxu0 %v102
    %331 = vmatpush.msra.mxu0 %v101
    %332 = vmatpush.msra.mxu0 %v100
    %333 = vmatmul.f32.gmra.mxu0 %v315
    %v334 = vpop.f32.mrf.mxu0
    %v335 = vadd.f32 0.0, %v334
    %336 = vdwg.mxu0
    %v338 = vrot.slane %v335, 2
    %v340 = vadd.f32 %v95, %v338
    %v341 = vxor.u32 %v340, 2147483648
    %v342 = vmul.f32 %v341, 1.442695
    %v343 = vpow.pop %v342
    %v344 = vadd.f32 %v343, 1.0
    %v345 = vrcp.pop %v344
    %v346 = vmul.f32 %v344, %v345
    %v347 = vsub.f32 1.0, %v346
    %v348 = vmul.f32 %v345, %v347
    %v349 = vadd.f32 %v345, %v348
    %vm350 = vweird.f32 %v344
    %vm351 = vweird.f32 %v345
    %vm352 = vmor %vm350, %vm351
    %v353 = vsel %vm352, %v345, %v349
    %v354 = vand.u32 2147483647, %v344
    %vm355 = vcmp.eq.f32.partialorder %v354, 8.507059e+37
    %v356 = vand.u32 %v344, 2147483648
    %v357 = vor.u32 1.1754944e-38, %v356
    %v358 = vsel %vm355, %v357, %v353
    %v359 = vmul.f32 1.0, %v358
    %v360 = vtanh.pop %v340
    %v362 = vrot.slane %v304, 6
    %v364 = vmul.f32 %v359, %v362
    %366 = vrot.lane.b32.xlu0 %v360, 64
    %v367 = vpop.permute.xlu0 %366
    %v369 = vmul.f32 %v359, %v367
    %371 = vrot.lane.b32.xlu0 %v369, 32
    %v372 = vpop.permute.xlu0 %371
    %v374 = vadd.f32 %v364, %v372
    %v375 = vtanh.pop %v374
    %377 = vrot.lane.b32.xlu0 %v375, 64
    %v378 = vpop.permute.xlu0 %377
    %v380 = vmul.f32 %v359, %v378
    %v382 = vrot.slane %v380, 6
    %383 = vrot.lane.b32.xlu0 %v382, 32
    %v384 = vpop.permute.xlu0 %383
    %v385 = vsel %vm106, %v384, 0
    %387 = vmatpush.msra.mxu0 0.0
    %388 = vmatpush.msra.mxu0 0.0
    %389 = vmatpush.msra.mxu0 0.0
    %390 = vmatpush.msra.mxu0 0.0
    %391 = vmatpush.msra.mxu0 0.0
    %392 = vmatpush.msra.mxu0 0.0
    %393 = vmatpush.msra.mxu0 0.0
    %394 = vmatpush.msra.mxu0 0.0
    %395 = vmatpush.msra.mxu0 0.0
    %396 = vmatpush.msra.mxu0 0.0
    %397 = vmatpush.msra.mxu0 0.0
    %398 = vmatpush.msra.mxu0 0.0
    %399 = vmatpush.msra.mxu0 %v103
    %400 = vmatpush.msra.mxu0 %v102
    %401 = vmatpush.msra.mxu0 %v101
    %402 = vmatpush.msra.mxu0 %v100
    %403 = vmatmul.f32.gmra.mxu0 %v385
    %v404 = vpop.f32.mrf.mxu0
    %v405 = vadd.f32 0.0, %v404
    %406 = vdwg.mxu0
    %v407 = vadd.f32 %v98, %v405
    %v408 = vxor.u32 %v407, 2147483648
    %v409 = vmul.f32 %v408, 1.442695
    %v410 = vpow.pop %v409
    %v411 = vadd.f32 %v410, 1.0
    %v412 = vrcp.pop %v411
    %v413 = vmul.f32 %v411, %v412
    %v414 = vsub.f32 1.0, %v413
    %v415 = vmul.f32 %v412, %v414
    %v416 = vadd.f32 %v412, %v415
    %vm417 = vweird.f32 %v411
    %vm418 = vweird.f32 %v412
    %vm419 = vmor %vm417, %vm418
    %v420 = vsel %vm419, %v412, %v416
    %v421 = vand.u32 2147483647, %v411
    %vm422 = vcmp.eq.f32.partialorder %v421, 8.507059e+37
    %v423 = vand.u32 %v411, 2147483648
    %v424 = vor.u32 1.1754944e-38, %v423
    %v425 = vsel %vm422, %v424, %v420
    %v426 = vmul.f32 1.0, %v425
    %v427 = vtanh.pop %v407
    %v429 = vrot.slane %v374, 6
    %v431 = vmul.f32 %v426, %v429
    %433 = vrot.lane.b32.xlu0 %v427, 64
    %v434 = vpop.permute.xlu0 %433
    %v436 = vmul.f32 %v426, %v434
    %438 = vrot.lane.b32.xlu0 %v436, 32
    %v439 = vpop.permute.xlu0 %438
    %v441 = vadd.f32 %v431, %v439
    %v442 = vtanh.pop %v441
    %444 = vrot.lane.b32.xlu0 %v442, 64
    %v445 = vpop.permute.xlu0 %444
    %v447 = vmul.f32 %v426, %v445
    %449 = vrot.lane.b32.xlu0 %v447, 32
    %v450 = vpop.permute.xlu0 %449
    %v451 = vsel %vm106, %v450, 0
    %453 = vmatpush.msra.mxu0 0.0
    %454 = vmatpush.msra.mxu0 0.0
    %455 = vmatpush.msra.mxu0 0.0
    %456 = vmatpush.msra.mxu0 0.0
    %457 = vmatpush.msra.mxu0 0.0
    %458 = vmatpush.msra.mxu0 0.0
    %459 = vmatpush.msra.mxu0 0.0
    %460 = vmatpush.msra.mxu0 0.0
    %461 = vmatpush.msra.mxu0 0.0
    %462 = vmatpush.msra.mxu0 0.0
    %463 = vmatpush.msra.mxu0 0.0
    %464 = vmatpush.msra.mxu0 0.0
    %465 = vmatpush.msra.mxu0 %v103
    %466 = vmatpush.msra.mxu0 %v102
    %467 = vmatpush.msra.mxu0 %v101
    %468 = vmatpush.msra.mxu0 %v100
    %469 = vmatmul.f32.gmra.mxu0 %v451
    %v470 = vpop.f32.mrf.mxu0
    %v471 = vadd.f32 0.0, %v470
    %472 = vdwg.mxu0
    %v474 = vrot.slane %v471, 6
    %v476 = vadd.f32 %v98, %v474
    %v477 = vxor.u32 %v476, 2147483648
    %v478 = vmul.f32 %v477, 1.442695
    %v479 = vpow.pop %v478
    %v480 = vadd.f32 %v479, 1.0
    %v481 = vrcp.pop %v480
    %v482 = vmul.f32 %v480, %v481
    %v483 = vsub.f32 1.0, %v482
    %v484 = vmul.f32 %v481, %v483
    %v485 = vadd.f32 %v481, %v484
    %vm486 = vweird.f32 %v480
    %vm487 = vweird.f32 %v481
    %vm488 = vmor %vm486, %vm487
    %v489 = vsel %vm488, %v481, %v485
    %v490 = vand.u32 2147483647, %v480
    %vm491 = vcmp.eq.f32.partialorder %v490, 8.507059e+37
    %v492 = vand.u32 %v480, 2147483648
    %v493 = vor.u32 1.1754944e-38, %v492
    %v494 = vsel %vm491, %v493, %v489
    %v495 = vmul.f32 1.0, %v494
    %v496 = vtanh.pop %v476
    %v498 = vrot.slane %v441, 6
    %v500 = vmul.f32 %v495, %v498
    %502 = vrot.lane.b32.xlu0 %v496, 64
    %v503 = vpop.permute.xlu0 %502
    %v505 = vmul.f32 %v495, %v503
    %507 = vrot.lane.b32.xlu0 %v505, 32
    %v508 = vpop.permute.xlu0 %507
    %v510 = vadd.f32 %v500, %v508
    %v511 = vtanh.pop %v510
    %513 = vrot.lane.b32.xlu0 %v511, 64
    %v514 = vpop.permute.xlu0 %513
    %v516 = vmul.f32 %v495, %v514
    %v518 = vrot.slane %v516, 2
    %519 = vrot.lane.b32.xlu0 %v518, 32
    %v520 = vpop.permute.xlu0 %519
    %v521 = vsel %vm106, %v520, 0
    %523 = vmatpush.msra.mxu0 0.0
    %524 = vmatpush.msra.mxu0 0.0
    %525 = vmatpush.msra.mxu0 0.0
    %526 = vmatpush.msra.mxu0 0.0
    %527 = vmatpush.msra.mxu0 0.0
    %528 = vmatpush.msra.mxu0 0.0
    %529 = vmatpush.msra.mxu0 0.0
    %530 = vmatpush.msra.mxu0 0.0
    %531 = vmatpush.msra.mxu0 0.0
    %532 = vmatpush.msra.mxu0 0.0
    %533 = vmatpush.msra.mxu0 0.0
    %534 = vmatpush.msra.mxu0 0.0
    %535 = vmatpush.msra.mxu0 %v103
    %536 = vmatpush.msra.mxu0 %v102
    %537 = vmatpush.msra.mxu0 %v101
    %538 = vmatpush.msra.mxu0 %v100
    %539 = vmatmul.f32.gmra.mxu0 %v521
    %v540 = vpop.f32.mrf.mxu0
    %v541 = vadd.f32 0.0, %v540
    %542 = vdwg.mxu0
    %v544 = vrot.slane %v541, 4
    %v546 = vadd.f32 %v98, %v544
    %v547 = vxor.u32 %v546, 2147483648
    %v548 = vmul.f32 %v547, 1.442695
    %v549 = vpow.pop %v548
    %v550 = vadd.f32 %v549, 1.0
    %v551 = vrcp.pop %v550
    %v552 = vmul.f32 %v550, %v551
    %v553 = vsub.f32 1.0, %v552
    %v554 = vmul.f32 %v551, %v553
    %v555 = vadd.f32 %v551, %v554
    %vm556 = vweird.f32 %v550
    %vm557 = vweird.f32 %v551
    %vm558 = vmor %vm556, %vm557
    %v559 = vsel %vm558, %v551, %v555
    %v560 = vand.u32 2147483647, %v550
    %vm561 = vcmp.eq.f32.partialorder %v560, 8.507059e+37
    %v562 = vand.u32 %v550, 2147483648
    %v563 = vor.u32 1.1754944e-38, %v562
    %v564 = vsel %vm561, %v563, %v559
    %v565 = vmul.f32 1.0, %v564
    %v566 = vtanh.pop %v546
    %v568 = vrot.slane %v510, 6
    %v570 = vmul.f32 %v565, %v568
    %572 = vrot.lane.b32.xlu0 %v566, 64
    %v573 = vpop.permute.xlu0 %572
    %v575 = vmul.f32 %v565, %v573
    %577 = vrot.lane.b32.xlu0 %v575, 32
    %v578 = vpop.permute.xlu0 %577
    %v580 = vadd.f32 %v570, %v578
    %v581 = vtanh.pop %v580
    %583 = vrot.lane.b32.xlu0 %v581, 64
    %v584 = vpop.permute.xlu0 %583
    %v586 = vmul.f32 %v565, %v584
    %v588 = vrot.slane %v586, 4
    %589 = vrot.lane.b32.xlu0 %v588, 32
    %v590 = vpop.permute.xlu0 %589
    %v591 = vsel %vm106, %v590, 0
    %593 = vmatpush.msra.mxu0 0.0
    %594 = vmatpush.msra.mxu0 0.0
    %595 = vmatpush.msra.mxu0 0.0
    %596 = vmatpush.msra.mxu0 0.0
    %597 = vmatpush.msra.mxu0 0.0
    %598 = vmatpush.msra.mxu0 0.0
    %599 = vmatpush.msra.mxu0 0.0
    %600 = vmatpush.msra.mxu0 0.0
    %601 = vmatpush.msra.mxu0 0.0
    %602 = vmatpush.msra.mxu0 0.0
    %603 = vmatpush.msra.mxu0 0.0
    %604 = vmatpush.msra.mxu0 0.0
    %605 = vmatpush.msra.mxu0 %v103
    %606 = vmatpush.msra.mxu0 %v102
    %607 = vmatpush.msra.mxu0 %v101
    %608 = vmatpush.msra.mxu0 %v100
    %609 = vmatmul.f32.gmra.mxu0 %v591
    %v610 = vpop.f32.mrf.mxu0
    %v611 = vadd.f32 0.0, %v610
    %612 = vdwg.mxu0
    %v614 = vrot.slane %v611, 2
    %v616 = vadd.f32 %v98, %v614
    %v617 = vxor.u32 %v616, 2147483648
    %v618 = vmul.f32 %v617, 1.442695
    %v619 = vpow.pop %v618
    %v620 = vadd.f32 %v619, 1.0
    %v621 = vrcp.pop %v620
    %v622 = vmul.f32 %v620, %v621
    %v623 = vsub.f32 1.0, %v622
    %v624 = vmul.f32 %v621, %v623
    %v625 = vadd.f32 %v621, %v624
    %vm626 = vweird.f32 %v620
    %vm627 = vweird.f32 %v621
    %vm628 = vmor %vm626, %vm627
    %v629 = vsel %vm628, %v621, %v625
    %v630 = vand.u32 2147483647, %v620
    %vm631 = vcmp.eq.f32.partialorder %v630, 8.507059e+37
    %v632 = vand.u32 %v620, 2147483648
    %v633 = vor.u32 1.1754944e-38, %v632
    %v634 = vsel %vm631, %v633, %v629
    %v635 = vmul.f32 1.0, %v634
    %v636 = vtanh.pop %v616
    %v638 = vrot.slane %v580, 6
    %v640 = vmul.f32 %v635, %v638
    %642 = vrot.lane.b32.xlu0 %v636, 64
    %v643 = vpop.permute.xlu0 %642
    %v645 = vmul.f32 %v635, %v643
    %647 = vrot.lane.b32.xlu0 %v645, 32
    %v648 = vpop.permute.xlu0 %647
    %v650 = vadd.f32 %v640, %v648
    %v651 = vtanh.pop %v650
    %653 = vrot.lane.b32.xlu0 %v651, 64
    %v654 = vpop.permute.xlu0 %653
    %v656 = vmul.f32 %v635, %v654
    %v657 = vld [vmem:[%s6] sm:$0xff]
    %v658 = vld [vmem:[%s6 + $0x8] sm:$0xff]
    %v659 = vld [vmem:[%s6 + $0x10] sm:$0xff]
    %v660 = vld [vmem:[%s6 + $0x18] sm:$0xff]
    %v661 = vld [vmem:[%s7] sm:$0x1]
    %v663 = vperm.slane %v661, 0
    %v666 = vrot.slane %v656, 6
    %667 = vrot.lane.b32.xlu0 %v666, 32
    %v668 = vpop.permute.xlu0 %667
    %v669 = vsel %vm106, %v668, 0
    %671 = vmatpush.msra.mxu0 0.0
    %672 = vmatpush.msra.mxu0 0.0
    %673 = vmatpush.msra.mxu0 0.0
    %674 = vmatpush.msra.mxu0 0.0
    %675 = vmatpush.msra.mxu0 0.0
    %676 = vmatpush.msra.mxu0 0.0
    %677 = vmatpush.msra.mxu0 0.0
    %678 = vmatpush.msra.mxu0 0.0
    %679 = vmatpush.msra.mxu0 0.0
    %680 = vmatpush.msra.mxu0 0.0
    %681 = vmatpush.msra.mxu0 0.0
    %682 = vmatpush.msra.mxu0 0.0
    %683 = vmatpush.msra.mxu0 %v660
    %684 = vmatpush.msra.mxu0 %v659
    %685 = vmatpush.msra.mxu0 %v658
    %686 = vmatpush.msra.mxu0 %v657
    %687 = vmatmul.f32.gmra.mxu0 %v669
    %v688 = vpop.f32.mrf.mxu0
    %v689 = vadd.f32 %v663, %v688
    %690 = vdwg.mxu0
    %vm691 = vcmask 25600
    %v692 = vsel %vm691, %v689, -inf
    %693 = vmax.xlane.f32.xlu0 %v692
    %v694 = vpop.xlane.xlu0 %693
    %v695 = vsub.f32 %v689, %v694
    %v696 = vmul.f32 %v695, 1.442695
    %v697 = vpow.pop %v696
    %v698 = vsel %vm691, %v697, 0.0
    %699 = vadd.xlane.f32.xlu0 %v698
    %v700 = vpop.xlane.xlu0 %699
    %v701 = vlog2.pop %v700
    %v702 = vmul.f32 %v701, 0.6931472
    %v703 = vsub.f32 %v695, %v702
    %704 = vst.msk [vmem:[#allocation7] sm:$0x3] %vm691, %v703
    // Predicated region
    $region42: #{lstm_classifier_forward.1} parent=1 // pred_check
      _
    $region43: #{lstm_classifier_forward.1} parent=1 // pred_check_branch
      %706 = sbr.rel (0) target = $region45
    $region44: #{lstm_classifier_forward.1} parent=1 // pred_region
      %708 = vsyncadd [#allocation4], 0
      %s710 = sshll.u32 [#allocation7], 4
      %s711 = int_to_ptr.vmem [resolvable:$true] %s710
      %s712 = sshll.u32 %s8, 4
      %s713 = int_to_ptr.hbm [resolvable:$true] %s712
      %715 = dma.vmem_to_hbm [thread:$0]  %s711, 32, %s713, [#allocation4]
    $region45: #{lstm_classifier_forward.1} parent=1 // pred_fallthru
      _
    // Predicated region
    $region46: #{lstm_classifier_forward.1} parent=1 // pred_check
      _
    $region47: #{lstm_classifier_forward.1} parent=1 // pred_check_branch
      %717 = sbr.rel (0) target = $region49
    $region48: #{lstm_classifier_forward.1} parent=1 // pred_region
      %719 = dma.done [#allocation4], 32
    $region49: #{lstm_classifier_forward.1} parent=1 // pred_fallthru
      _
    %720 = vsyncpa [#allocation3], 1
    %721 = vsyncpa [#allocation6], 1
    %722 = vsyncpa [#allocation4], 1

</llo_original>
